<compile_context>
chip_gen: v6e
topology: v6e:2x2x1
jax: 0.10.0
libtpu: 0.0.40
codegen_flags: <defaults>
</compile_context>

<pallas_src>
import jax
import jax.numpy as jnp
from jax.experimental import pallas as pl
from jax.experimental.pallas import tpu as pltpu

H1, H2, H3 = 128, 128, 64


def _round_up(x, m):
    return -(-x // m) * m


def _is_legacy_tpu():
    """v2-v5: 128-deep MXU (layer-3 merge is not a win) and no bf16 VALU."""
    try:
        kind = jax.devices()[0].device_kind.lower()
    except Exception:
        return True
    return any(t in kind for t in ("v2", "v3", "v4", "v5"))


def _choose_tile_b(B, max_tile):
    """Adaptive batch tile: multiple of 16, <= ~max_tile, and an even number
    of (>= 2) grid steps for non-tiny batches (v7x has 2 TensorCores)."""
    rb = _round_up(B, 16)
    if rb <= 64:
        return rb                      # tiny batch: one tile, minimal padding
    n = max(2, -(-rb // max_tile))
    if n % 2:
        n += 1                         # even step count -> balanced megacore
    return _round_up(-(-B // n), 16)


def _critic_kernel_split(x_ref, w1_ref, b1_ref, w2_ref, b2_ref,
                         w3h_ref, w3xa_ref, b3_ref, w4_ref, b4_ref, out_ref):
    """v2-v5 path: two layer-3 matmuls, f32 elementwise epilogues."""
    x = x_ref[...]                                            # (tb, S+A) bf16
    h1 = jnp.dot(x, w1_ref[...], preferred_element_type=jnp.float32)
    h1 = jnp.maximum(h1 + b1_ref[...], 0.0)
    h2 = jnp.dot(h1.astype(jnp.bfloat16), w2_ref[...],
                 preferred_element_type=jnp.float32)
    h2 = jnp.maximum(h2 + b2_ref[...], 0.0)
    # cat([h2, action]) @ W3  ==  h2 @ W3[:128]  +  x @ [zeros(S); W3[128:]]
    h3 = (jnp.dot(h2.astype(jnp.bfloat16), w3h_ref[...],
                  preferred_element_type=jnp.float32)
          + jnp.dot(x, w3xa_ref[...], preferred_element_type=jnp.float32))
    h3 = jnp.maximum(h3 + b3_ref[...], 0.0)
    # Linear(64, 1): VPU multiply + XLU lane reduce; b4 scalar from SMEM.
    q = jnp.sum(h3 * w4_ref[...], axis=-1, keepdims=True) + b4_ref[0]
    out_ref[...] = q.astype(out_ref.dtype)


def _critic_kernel_merged(x_ref, w1_ref, b1_ref, w2_ref, b2_ref,
                          w3_ref, b3_ref, w4_ref, b4_ref, out_ref, z_ref):
    """v6e/v7x path: single K = 128+S+A layer-3 matmul, bf16 epilogues."""
    x = x_ref[...]                                            # (tb, S+A) bf16
    h1 = jnp.dot(x, w1_ref[...], preferred_element_type=jnp.float32)
    h1 = jnp.maximum(h1.astype(jnp.bfloat16) + b1_ref[...], 0.0)
    h2 = jnp.dot(h1, w2_ref[...], preferred_element_type=jnp.float32)
    h2 = jnp.maximum(h2.astype(jnp.bfloat16) + b2_ref[...], 0.0)
    # z = [h2 | state, action]; the W3 rows that line up with `state` are zero,
    # so this is exactly cat([h2, action]) @ W3 done in one MXU pass (K <= 256).
    xa = x.shape[-1]
    z_ref[:, :H2] = h2
    z_ref[:, H2:H2 + xa] = x
    h3 = jnp.dot(z_ref[...], w3_ref[...], preferred_element_type=jnp.float32)
    h3 = jnp.maximum(h3.astype(jnp.bfloat16) + b3_ref[...], 0.0)
    q = (jnp.sum(h3.astype(jnp.float32) * w4_ref[...], axis=-1, keepdims=True)
         + b4_ref[0])
    out_ref[...] = q.astype(out_ref.dtype)


def deterministic_critic_net(state, action, params, *, max_tile_b=4096):
    """Batch-tiled forward pass; handles any batch size via tail padding."""
    B, S = state.shape
    A = action.shape[1]

    legacy = _is_legacy_tpu()
    epi_dtype = jnp.float32 if legacy else jnp.bfloat16
    bf16 = lambda a: a.astype(jnp.bfloat16)

    # Single (B, S+A) bf16 input stream.
    x = bf16(jnp.concatenate([state, action], axis=1))

    tile_b = _choose_tile_b(B, max_tile_b)
    assert tile_b % 16 == 0, tile_b
    pad = (-B) % tile_b
    if pad:
        x = jnp.pad(x, ((0, pad), (0, 0)))
    Bp = B + pad
    num_tiles = Bp // tile_b

    # Cast f32 masters to bf16 MXU operands at call time; zero-pad weights so
    # the kernel never slices the concatenated input.
    w1 = bf16(jnp.concatenate(
        [params["w1"], jnp.zeros((A, H1), jnp.float32)], axis=0))   # (S+A, 128)
    w2 = bf16(params["w2"])                                         # (128, 128)
    b1 = params["b1"].astype(epi_dtype)
    b2 = params["b2"].astype(epi_dtype)
    b3 = params["b3"].astype(epi_dtype)
    w3 = params["w3"]                                               # (128+A, 64) f32
    w4 = params["w4"]                                               # (1, 64)    f32
    b4 = params["b4"]                                               # (1,)       f32

    def resident(a):
        # Whole array per block, constant index -> stays VMEM-resident.
        return pl.BlockSpec(a.shape, lambda i: (0, 0))

    if legacy:
        kernel = _critic_kernel_split
        w3h = bf16(w3[:H2])                                         # (128, 64)
        w3xa = bf16(jnp.concatenate(
            [jnp.zeros((S, H3), jnp.float32), w3[H2:]], axis=0))    # (S+A, 64)
        weights = (w1, b1, w2, b2, w3h, w3xa, b3, w4)
        scratch_shapes = []
    else:
        kernel = _critic_kernel_merged
        w3_full = bf16(jnp.concatenate(
            [w3[:H2], jnp.zeros((S, H3), jnp.float32), w3[H2:]],
            axis=0))                                                # (128+S+A, 64)
        weights = (w1, b1, w2, b2, w3_full, b3, w4)
        scratch_shapes = [pltpu.VMEM((tile_b, H2 + S + A), jnp.bfloat16)]

    in_specs = ([pl.BlockSpec((tile_b, S + A), lambda i: (i, 0))]
                + [resident(w) for w in weights]
                + [pl.BlockSpec(memory_space=pltpu.MemorySpace.SMEM)])  # b4

    grid_spec = pltpu.PrefetchScalarGridSpec(
        num_scalar_prefetch=0,
        grid=(num_tiles,),
        in_specs=in_specs,
        out_specs=pl.BlockSpec((tile_b, 1), lambda i: (i, 0)),
        scratch_shapes=scratch_shapes,
    )

    flops = 2 * Bp * (S * H1 + H1 * H2 + (H2 + A) * H3 + H3)
    bytes_accessed = int(x.size * 2 + Bp * 4 + 4
                         + sum(int(w.size) * w.dtype.itemsize for w in weights))

    out = pl.pallas_call(
        kernel,
        out_shape=jax.ShapeDtypeStruct((Bp, 1), jnp.float32),
        grid_spec=grid_spec,
        compiler_params=pltpu.CompilerParams(
            dimension_semantics=("parallel",),
            vmem_limit_bytes=32 * 1024 * 1024),
        cost_estimate=pl.CostEstimate(flops=flops, transcendentals=0,
                                      bytes_accessed=bytes_accessed),
    )(x, *weights, b4)

    return out[:B]


def init_params(key, state_size, action_size):
    """f32 master params mimicking PyTorch nn.Linear default init
    (uniform +/- 1/sqrt(fan_in)); weights stored transposed as (in, out)."""
    def linear(key, fan_in, fan_out):
        kw, kb = jax.random.split(key)
        bound = 1.0 / jnp.sqrt(float(fan_in))
        w = jax.random.uniform(kw, (fan_in, fan_out), jnp.float32, -bound, bound)
        b = jax.random.uniform(kb, (1, fan_out), jnp.float32, -bound, bound)
        return w, b

    k1, k2, k3, k4 = jax.random.split(key, 4)
    w1, b1 = linear(k1, state_size, H1)
    w2, b2 = linear(k2, H1, H2)
    w3, b3 = linear(k3, H2 + action_size, H3)
    w4, b4 = linear(k4, H3, 1)
    return {"w1": w1, "b1": b1, "w2": w2, "b2": b2, "w3": w3, "b3": b3,
            "w4": jnp.transpose(w4),       # (1, 64) row for the VPU/XLU head
            "b4": b4.reshape(1)}           # (1,) scalar -> SMEM


def reference(state, action, params):
    """Pure-JAX f32 reference matching the PyTorch module."""
    h1 = jnp.maximum(state @ params["w1"] + params["b1"], 0.0)
    h2 = jnp.maximum(h1 @ params["w2"] + params["b2"], 0.0)
    z = jnp.concatenate([h2, action], axis=1)
    h3 = jnp.maximum(z @ params["w3"] + params["b3"], 0.0)
    return h3 @ jnp.transpose(params["w4"]) + params["b4"]


if __name__ == "__main__":
    state_size, action_size = 16, 4

    key = jax.random.PRNGKey(0)
    k_data, k_params = jax.random.split(key)
    params = init_params(k_params, state_size, action_size)

    # Small single-tile batch and a multi-tile batch with a padded tail.
    for batch in (8, 200):
        ks, ka = jax.random.split(jax.random.fold_in(k_data, batch))
        state = jax.random.normal(ks, (batch, state_size), jnp.float32)
        action = jax.random.normal(ka, (batch, action_size), jnp.float32)

        q = deterministic_critic_net(state, action, params)
        jax.block_until_ready(q)

        q_ref = reference(state, action, params)
        assert q.shape == (batch, 1)
        # bf16 MXU operands vs f32 reference -> relaxed tolerance.
        assert jnp.allclose(q, q_ref, atol=5e-2, rtol=5e-2), (
            float(jnp.max(jnp.abs(q - q_ref))))

    print("KERNEL_OK")
</pallas_src>

<mosaic_0001>
module attributes {stable_mosaic.version = 11 : i64} {
  func.func @_critic_kernel_merged(%arg0: i32, %arg1: memref<16x20xbf16, #tpu.memory_space<vmem>>, %arg2: memref<20x128xbf16, #tpu.memory_space<vmem>>, %arg3: memref<1x128xbf16, #tpu.memory_space<vmem>>, %arg4: memref<128x128xbf16, #tpu.memory_space<vmem>>, %arg5: memref<1x128xbf16, #tpu.memory_space<vmem>>, %arg6: memref<148x64xbf16, #tpu.memory_space<vmem>>, %arg7: memref<1x64xbf16, #tpu.memory_space<vmem>>, %arg8: memref<1x64xf32, #tpu.memory_space<vmem>>, %arg9: memref<1xf32, #tpu.memory_space<smem>>, %arg10: memref<16x1xf32, #tpu.memory_space<vmem>>, %arg11: memref<16x148xbf16, #tpu.memory_space<vmem>>) attributes {dimension_semantics = [#tpu.dimension_semantics<parallel>], iteration_bounds = array<i64: 1>, scalar_prefetch = 0 : i64, scratch_operands = 1 : i64, tpu.core_type = #tpu.core_type<tc>, window_params = [{transform_indices = @transform_0, window_bounds = array<i64: 16, 20>}, {pipeline_mode = #tpu.pipeline_mode<synchronous>, transform_indices = @transform_1, window_bounds = array<i64: 20, 128>}, {pipeline_mode = #tpu.pipeline_mode<synchronous>, transform_indices = @transform_2, window_bounds = array<i64: 1, 128>}, {pipeline_mode = #tpu.pipeline_mode<synchronous>, transform_indices = @transform_3, window_bounds = array<i64: 128, 128>}, {pipeline_mode = #tpu.pipeline_mode<synchronous>, transform_indices = @transform_4, window_bounds = array<i64: 1, 128>}, {pipeline_mode = #tpu.pipeline_mode<synchronous>, transform_indices = @transform_5, window_bounds = array<i64: 148, 64>}, {pipeline_mode = #tpu.pipeline_mode<synchronous>, transform_indices = @transform_6, window_bounds = array<i64: 1, 64>}, {pipeline_mode = #tpu.pipeline_mode<synchronous>, transform_indices = @transform_7, window_bounds = array<i64: 1, 64>}, {transform_indices = @transform_8, window_bounds = array<i64: 1>}, {transform_indices = @transform_9, window_bounds = array<i64: 16, 1>}]} {
    %c0 = arith.constant 0 : index
    %c0_0 = arith.constant 0 : index
    %0 = vector.load %arg1[%c0, %c0_0] : memref<16x20xbf16, #tpu.memory_space<vmem>>, vector<16x20xbf16>
    %c0_1 = arith.constant 0 : index
    %c0_2 = arith.constant 0 : index
    %1 = vector.load %arg2[%c0_1, %c0_2] : memref<20x128xbf16, #tpu.memory_space<vmem>>, vector<20x128xbf16>
    %cst = arith.constant dense<0.000000e+00> : vector<16x128xf32>
    %2 = tpu.matmul %0, %1, %cst {dimension_numbers = #tpu.dot_dimension_numbers<[1], [0], [0], [1], [0, 0, 1, 1], [], []>} : vector<16x20xbf16>, vector<20x128xbf16>, vector<16x128xf32> -> vector<16x128xf32>
    %3 = arith.truncf %2 : vector<16x128xf32> to vector<16x128xbf16>
    %c0_3 = arith.constant 0 : index
    %c0_4 = arith.constant 0 : index
    %4 = vector.load %arg3[%c0_3, %c0_4] : memref<1x128xbf16, #tpu.memory_space<vmem>>, vector<1x128xbf16>
    %5 = vector.broadcast %4 : vector<1x128xbf16> to vector<16x128xbf16>
    %6 = arith.addf %3, %5 : vector<16x128xbf16>
    %cst_5 = arith.constant 0.000000e+00 : bf16
    %7 = vector.broadcast %cst_5 : bf16 to vector<16x128xbf16>
    %8 = arith.maximumf %6, %7 : vector<16x128xbf16>
    %c0_6 = arith.constant 0 : index
    %c0_7 = arith.constant 0 : index
    %9 = vector.load %arg4[%c0_6, %c0_7] : memref<128x128xbf16, #tpu.memory_space<vmem>>, vector<128x128xbf16>
    %cst_8 = arith.constant dense<0.000000e+00> : vector<16x128xf32>
    %10 = tpu.matmul %8, %9, %cst_8 {dimension_numbers = #tpu.dot_dimension_numbers<[1], [0], [0], [1], [0, 0, 1, 1], [], []>} : vector<16x128xbf16>, vector<128x128xbf16>, vector<16x128xf32> -> vector<16x128xf32>
    %11 = arith.truncf %10 : vector<16x128xf32> to vector<16x128xbf16>
    %c0_9 = arith.constant 0 : index
    %c0_10 = arith.constant 0 : index
    %12 = vector.load %arg5[%c0_9, %c0_10] : memref<1x128xbf16, #tpu.memory_space<vmem>>, vector<1x128xbf16>
    %13 = vector.broadcast %12 : vector<1x128xbf16> to vector<16x128xbf16>
    %14 = arith.addf %11, %13 : vector<16x128xbf16>
    %cst_11 = arith.constant 0.000000e+00 : bf16
    %15 = vector.broadcast %cst_11 : bf16 to vector<16x128xbf16>
    %16 = arith.maximumf %14, %15 : vector<16x128xbf16>
    %c0_12 = arith.constant 0 : index
    %c0_13 = arith.constant 0 : index
    %17 = vector.load %arg11[%c0_12, %c0_13] : memref<16x148xbf16, #tpu.memory_space<vmem>>, vector<16x128xbf16>
    tpu.vector_store %arg11[%c0_12, %c0_13], %16 {strides = array<i32>} : memref<16x148xbf16, #tpu.memory_space<vmem>>, vector<16x128xbf16>,
    %c0_14 = arith.constant 0 : index
    %c128 = arith.constant 128 : index
    %18 = vector.load %arg11[%c0_14, %c128] : memref<16x148xbf16, #tpu.memory_space<vmem>>, vector<16x20xbf16>
    tpu.vector_store %arg11[%c0_14, %c128], %0 {strides = array<i32>} : memref<16x148xbf16, #tpu.memory_space<vmem>>, vector<16x20xbf16>,
    %c0_15 = arith.constant 0 : index
    %c0_16 = arith.constant 0 : index
    %19 = vector.load %arg11[%c0_15, %c0_16] : memref<16x148xbf16, #tpu.memory_space<vmem>>, vector<16x148xbf16>
    %c0_17 = arith.constant 0 : index
    %c0_18 = arith.constant 0 : index
    %20 = vector.load %arg6[%c0_17, %c0_18] : memref<148x64xbf16, #tpu.memory_space<vmem>>, vector<148x64xbf16>
    %cst_19 = arith.constant dense<0.000000e+00> : vector<16x64xf32>
    %21 = tpu.matmul %19, %20, %cst_19 {dimension_numbers = #tpu.dot_dimension_numbers<[1], [0], [0], [1], [0, 0, 1, 1], [], []>} : vector<16x148xbf16>, vector<148x64xbf16>, vector<16x64xf32> -> vector<16x64xf32>
    %22 = arith.truncf %21 : vector<16x64xf32> to vector<16x64xbf16>
    %c0_20 = arith.constant 0 : index
    %c0_21 = arith.constant 0 : index
    %23 = vector.load %arg7[%c0_20, %c0_21] : memref<1x64xbf16, #tpu.memory_space<vmem>>, vector<1x64xbf16>
    %24 = vector.broadcast %23 : vector<1x64xbf16> to vector<16x64xbf16>
    %25 = arith.addf %22, %24 : vector<16x64xbf16>
    %cst_22 = arith.constant 0.000000e+00 : bf16
    %26 = vector.broadcast %cst_22 : bf16 to vector<16x64xbf16>
    %27 = arith.maximumf %25, %26 : vector<16x64xbf16>
    %28 = arith.extf %27 : vector<16x64xbf16> to vector<16x64xf32>
    %c0_23 = arith.constant 0 : index
    %c0_24 = arith.constant 0 : index
    %29 = vector.load %arg8[%c0_23, %c0_24] : memref<1x64xf32, #tpu.memory_space<vmem>>, vector<1x64xf32>
    %30 = vector.broadcast %29 : vector<1x64xf32> to vector<16x64xf32>
    %31 = arith.mulf %28, %30 : vector<16x64xf32>
    %cst_25 = arith.constant dense<0.000000e+00> : vector<16xf32>
    %32 = vector.multi_reduction <add>, %31, %cst_25 [1] : vector<16x64xf32> to vector<16xf32>
    %33 = vector.shape_cast %32 : vector<16xf32> to vector<16x1xf32>
    %c0_26 = arith.constant 0 : index
    %34 = memref.load %arg9[%c0_26] : memref<1xf32, #tpu.memory_space<smem>>
    %35 = vector.broadcast %34 : f32 to vector<16x1xf32>
    %36 = arith.addf %33, %35 : vector<16x1xf32>
    %c0_27 = arith.constant 0 : index
    %c0_28 = arith.constant 0 : index
    %37 = vector.load %arg10[%c0_27, %c0_28] : memref<16x1xf32, #tpu.memory_space<vmem>>, vector<16x1xf32>
    tpu.vector_store %arg10[%c0_27, %c0_28], %36 {strides = array<i32>} : memref<16x1xf32, #tpu.memory_space<vmem>>, vector<16x1xf32>,
    return
  }
  func.func @transform_0(%arg0: i32) -> (i32, i32) {
    %c0_i32 = arith.constant 0 : i32
    %c0_i32_0 = arith.constant 0 : i32
    return %arg0, %c0_i32 : i32, i32
  }
  func.func @transform_1(%arg0: i32) -> (i32, i32) {
    %c0_i32 = arith.constant 0 : i32
    %c0_i32_0 = arith.constant 0 : i32
    %c0_i32_1 = arith.constant 0 : i32
    return %c0_i32, %c0_i32_0 : i32, i32
  }
  func.func @transform_2(%arg0: i32) -> (i32, i32) {
    %c0_i32 = arith.constant 0 : i32
    %c0_i32_0 = arith.constant 0 : i32
    %c0_i32_1 = arith.constant 0 : i32
    return %c0_i32, %c0_i32_0 : i32, i32
  }
  func.func @transform_3(%arg0: i32) -> (i32, i32) {
    %c0_i32 = arith.constant 0 : i32
    %c0_i32_0 = arith.constant 0 : i32
    %c0_i32_1 = arith.constant 0 : i32
    return %c0_i32, %c0_i32_0 : i32, i32
  }
  func.func @transform_4(%arg0: i32) -> (i32, i32) {
    %c0_i32 = arith.constant 0 : i32
    %c0_i32_0 = arith.constant 0 : i32
    %c0_i32_1 = arith.constant 0 : i32
    return %c0_i32, %c0_i32_0 : i32, i32
  }
  func.func @transform_5(%arg0: i32) -> (i32, i32) {
    %c0_i32 = arith.constant 0 : i32
    %c0_i32_0 = arith.constant 0 : i32
    %c0_i32_1 = arith.constant 0 : i32
    return %c0_i32, %c0_i32_0 : i32, i32
  }
  func.func @transform_6(%arg0: i32) -> (i32, i32) {
    %c0_i32 = arith.constant 0 : i32
    %c0_i32_0 = arith.constant 0 : i32
    %c0_i32_1 = arith.constant 0 : i32
    return %c0_i32, %c0_i32_0 : i32, i32
  }
  func.func @transform_7(%arg0: i32) -> (i32, i32) {
    %c0_i32 = arith.constant 0 : i32
    %c0_i32_0 = arith.constant 0 : i32
    %c0_i32_1 = arith.constant 0 : i32
    return %c0_i32, %c0_i32_0 : i32, i32
  }
  func.func @transform_8(%arg0: i32) -> i32 {
    %c0_i32 = arith.constant 0 : i32
    %c0_i32_0 = arith.constant 0 : i32
    return %c0_i32 : i32
  }
  func.func @transform_9(%arg0: i32) -> (i32, i32) {
    %c0_i32 = arith.constant 0 : i32
    %c0_i32_0 = arith.constant 0 : i32
    return %arg0, %c0_i32 : i32, i32
  }
}

</mosaic_0001>

<llo_original>
// kernel: tpu_custom_call.1
$region0: #{tpu_custom_call.1}
  #allocation0 [shape = 'u32[]', space=smem, size = 0x4, offset = 0x4, fixed_abs, tag = 'smem constant byte address 0x4 - core index']
  #allocation1 [shape = 'u32[144,128]{1,0:T(1,128)}', space=vmem, size = 0x12000, scoped, tag = 'internal scratch']
  #allocation2 [shape = 'bf16[16,148]{1,0:T(8,128)(2,1)}', space=vmem, size = 0x2000, scoped, tag = 'scratch operand']
  #allocation3 [shape = 'f32[1]{0:T(128)S(6)}', space=smem, size = 0x200, scoped, tag = 'scoped memory for tpu_custom_call.1']
  %s0 = inlined_call_operand.vmem [shape: bf16[16,20], index: 0, kind: input, shape index: {}]
  %s1 = inlined_call_operand.vmem [shape: bf16[20,128], index: 1, kind: input, shape index: {}]
  %s2 = inlined_call_operand.vmem [shape: bf16[1,128], index: 2, kind: input, shape index: {}]
  %s3 = inlined_call_operand.vmem [shape: bf16[128,128], index: 3, kind: input, shape index: {}]
  %s4 = inlined_call_operand.vmem [shape: bf16[1,128], index: 4, kind: input, shape index: {}]
  %s5 = inlined_call_operand.vmem [shape: bf16[148,64], index: 5, kind: input, shape index: {}]
  %s6 = inlined_call_operand.vmem [shape: bf16[1,64], index: 6, kind: input, shape index: {}]
  %s7 = inlined_call_operand.vmem [shape: f32[1,64], index: 7, kind: input, shape index: {}]
  %s8 = inlined_call_operand.<no memory space> [shape: f32[1], index: 8, kind: input, shape index: {}]
  %s9 = inlined_call_operand.vmem [shape: f32[16,1], index: 9, kind: output, shape index: {}]
  %s10 = sld [smem:[#allocation0]]
  $region46: #{tpu_custom_call.1} parent=0
    _
  %s12 = ssub.s32 1, %s10
  %s13 = scalar_select 0, %s12, %s10
  %14 = sst [smem:[#allocation3]] %s8
  // Predicated region
  $region2: #{tpu_custom_call.1} parent=0 // pred_check
    _
  $region3: #{tpu_custom_call.1} parent=0 // pred_check_branch
    %16 = sbr.rel (0) target = $region5
  $region4: #{tpu_custom_call.1} parent=0 // pred_region
    _
  $region5: #{tpu_custom_call.1} parent=0 // pred_fallthru
    _
  // Predicated region
  $region6: #{tpu_custom_call.1} parent=0 // pred_check
    _
  $region7: #{tpu_custom_call.1} parent=0 // pred_check_branch
    %18 = sbr.rel (0) target = $region9
  $region8: #{tpu_custom_call.1} parent=0 // pred_region
    _
  $region9: #{tpu_custom_call.1} parent=0 // pred_fallthru
    _
  // Predicated region
  $region10: #{tpu_custom_call.1} parent=0 // pred_check
    _
  $region11: #{tpu_custom_call.1} parent=0 // pred_check_branch
    %20 = sbr.rel (0) target = $region13
  $region12: #{tpu_custom_call.1} parent=0 // pred_region
    _
  $region13: #{tpu_custom_call.1} parent=0 // pred_fallthru
    _
  // Predicated region
  $region14: #{tpu_custom_call.1} parent=0 // pred_check
    _
  $region15: #{tpu_custom_call.1} parent=0 // pred_check_branch
    %22 = sbr.rel (0) target = $region17
  $region16: #{tpu_custom_call.1} parent=0 // pred_region
    _
  $region17: #{tpu_custom_call.1} parent=0 // pred_fallthru
    _
  // Predicated region
  $region18: #{tpu_custom_call.1} parent=0 // pred_check
    _
  $region19: #{tpu_custom_call.1} parent=0 // pred_check_branch
    %24 = sbr.rel (0) target = $region21
  $region20: #{tpu_custom_call.1} parent=0 // pred_region
    _
  $region21: #{tpu_custom_call.1} parent=0 // pred_fallthru
    _
  // Predicated region
  $region22: #{tpu_custom_call.1} parent=0 // pred_check
    _
  $region23: #{tpu_custom_call.1} parent=0 // pred_check_branch
    %26 = sbr.rel (0) target = $region25
  $region24: #{tpu_custom_call.1} parent=0 // pred_region
    _
  $region25: #{tpu_custom_call.1} parent=0 // pred_fallthru
    _
  // Predicated region
  $region26: #{tpu_custom_call.1} parent=0 // pred_check
    _
  $region27: #{tpu_custom_call.1} parent=0 // pred_check_branch
    %28 = sbr.rel (0) target = $region29
  $region28: #{tpu_custom_call.1} parent=0 // pred_region
    _
  $region29: #{tpu_custom_call.1} parent=0 // pred_fallthru
    _
  // Predicated region
  $region30: #{tpu_custom_call.1} parent=0 // pred_check
    _
  $region31: #{tpu_custom_call.1} parent=0 // pred_check_branch
    %30 = sbr.rel (0) target = $region33
  $region32: #{tpu_custom_call.1} parent=0 // pred_region
    _
  $region33: #{tpu_custom_call.1} parent=0 // pred_fallthru
    _
  // Predicated region
  $region34: #{tpu_custom_call.1} parent=0 // pred_check
    _
  $region35: #{tpu_custom_call.1} parent=0 // pred_check_branch
    %32 = sbr.rel (0) target = $region37
  $region36: #{tpu_custom_call.1} parent=0 // pred_region
    _
  $region37: #{tpu_custom_call.1} parent=0 // pred_fallthru
    _
  %v34 = vld [vmem:[%s0] sm:$0xf]
  %v35 = vld [vmem:[%s0 + $0x4] sm:$0xf]
  %v36 = vld [vmem:[%s1] sm:$0xf]
  %v37 = vld [vmem:[%s1 + $0x4] sm:$0xf]
  %v38 = vld [vmem:[%s1 + $0x8] sm:$0x3]
  %v41 = vunpack.c.l.b16 %v34
  %v42 = vunpack.c.l.b16 %v35
  %v43 = vpack.c.b16 %v42, %v41
  %v47 = vunpack.c.l.b16 %v36
  %v48 = vunpack.c.l.b16 %v37
  %v49 = vunpack.c.l.b16 %v38
  %v50 = vpack.c.b16 %v48, %v47
  %v51 = vpack.c.b16 %v49, %v49
  %vm53 = vcmask 162816
  %v55 = vsel %vm53, %v43, 0
  %vm57 = vcmask 1041408
  %v59 = vsel %vm57, %v51, 0
  %61 = vmatprep.subr.bf16.mxu0 0
  %62 = vmatpush1.bf16.msra.mxu0 0
  %63 = vmatprep.subr.bf16.mxu0 0
  %64 = vmatpush1.bf16.msra.mxu0 0
  %65 = vmatprep.subr.bf16.mxu0 0
  %66 = vmatpush1.bf16.msra.mxu0 0
  %67 = vmatprep.subr.bf16.mxu0 0
  %68 = vmatpush1.bf16.msra.mxu0 0
  %69 = vmatprep.subr.bf16.mxu0 0
  %70 = vmatpush1.bf16.msra.mxu0 0
  %71 = vmatprep.subr.bf16.mxu0 0
  %72 = vmatpush1.bf16.msra.mxu0 0
  %73 = vmatprep.subr.bf16.mxu0 0
  %74 = vmatpush1.bf16.msra.mxu0 %v59
  %75 = vmatprep.subr.bf16.mxu0 0
  %76 = vmatpush1.bf16.msra.mxu0 %v50
  %77 = vmatprep.subr.bf16.mxu0 0
  %78 = vmatpush2.bf16.msra.mxu0 0
  %79 = vmatprep.subr.bf16.mxu0 0
  %80 = vmatpush2.bf16.msra.mxu0 0
  %81 = vmatprep.subr.bf16.mxu0 0
  %82 = vmatpush2.bf16.msra.mxu0 0
  %83 = vmatprep.subr.bf16.mxu0 0
  %84 = vmatpush2.bf16.msra.mxu0 0
  %85 = vmatprep.subr.bf16.mxu0 0
  %86 = vmatpush2.bf16.msra.mxu0 0
  %87 = vmatprep.subr.bf16.mxu0 0
  %88 = vmatpush2.bf16.msra.mxu0 0
  %89 = vmatprep.subr.bf16.mxu0 0
  %90 = vmatpush2.bf16.msra.mxu0 0
  %91 = vmatprep.subr.bf16.mxu0 0
  %92 = vmatpush2.bf16.msra.mxu0 0
  %93 = vmatprep.mubr.bf16.mxu0 0
  %94 = vmatmul.mubr.bf16.gmra.mxu0 %v55
  %v95 = vpop.f32.mrf.mxu0
  %v96 = vadd.f32 0.0, %v95
  %v97 = vpop.f32.mrf.mxu0
  %v98 = vpop.f32.mrf.mxu0
  %v99 = vadd.f32 0.0, %v98
  %v100 = vpop.f32.mrf.mxu0
  %101 = vdwg.mxu0
  %v102 = vpack.c.bf16 %v99, %v96
  %v103 = vld [vmem:[%s2] sm:$0x1]
  %v105 = vpack.i.b16 %v103, %v103
  %v107 = vlaneseq
  %v108 = vshrl.u32 %v107, 7
  %v109 = vsub.s32 0, %v108
  %v110 = vrot.slane %v105, %v109
  %v111 = vadd.bf16 %v102, %v110
  %v112 = vmax.bf16 %v111, 0
  %v113 = vld [vmem:[%s3] sm:$0xf]
  %v114 = vld [vmem:[%s3 + $0x4] sm:$0xf]
  %v115 = vld [vmem:[%s3 + $0x8] sm:$0xf]
  %v116 = vld [vmem:[%s3 + $0xc] sm:$0xf]
  %v117 = vld [vmem:[%s3 + $0x10] sm:$0xf]
  %v118 = vld [vmem:[%s3 + $0x14] sm:$0xf]
  %v119 = vld [vmem:[%s3 + $0x18] sm:$0xf]
  %v120 = vld [vmem:[%s3 + $0x1c] sm:$0xf]
  %v121 = vld [vmem:[%s3 + $0x20] sm:$0xf]
  %v122 = vld [vmem:[%s3 + $0x24] sm:$0xf]
  %v123 = vld [vmem:[%s3 + $0x28] sm:$0xf]
  %v124 = vld [vmem:[%s3 + $0x2c] sm:$0xf]
  %v125 = vld [vmem:[%s3 + $0x30] sm:$0xf]
  %v126 = vld [vmem:[%s3 + $0x34] sm:$0xf]
  %v127 = vld [vmem:[%s3 + $0x38] sm:$0xf]
  %v128 = vld [vmem:[%s3 + $0x3c] sm:$0xf]
  %v145 = vunpack.c.l.b16 %v113
  %v146 = vunpack.c.l.b16 %v114
  %v147 = vunpack.c.l.b16 %v115
  %v148 = vunpack.c.l.b16 %v116
  %v149 = vunpack.c.l.b16 %v117
  %v150 = vunpack.c.l.b16 %v118
  %v151 = vunpack.c.l.b16 %v119
  %v152 = vunpack.c.l.b16 %v120
  %v153 = vunpack.c.l.b16 %v121
  %v154 = vunpack.c.l.b16 %v122
  %v155 = vunpack.c.l.b16 %v123
  %v156 = vunpack.c.l.b16 %v124
  %v157 = vunpack.c.l.b16 %v125
  %v158 = vunpack.c.l.b16 %v126
  %v159 = vunpack.c.l.b16 %v127
  %v160 = vunpack.c.l.b16 %v128
  %v161 = vpack.c.b16 %v146, %v145
  %v162 = vpack.c.b16 %v148, %v147
  %v163 = vpack.c.b16 %v150, %v149
  %v164 = vpack.c.b16 %v152, %v151
  %v165 = vpack.c.b16 %v154, %v153
  %v166 = vpack.c.b16 %v156, %v155
  %v167 = vpack.c.b16 %v158, %v157
  %v168 = vpack.c.b16 %v160, %v159
  %177 = vmatprep.subr.bf16.mxu0 0
  %178 = vmatpush1.bf16.msra.mxu0 %v168
  %179 = vmatprep.subr.bf16.mxu0 0
  %180 = vmatpush1.bf16.msra.mxu0 %v167
  %181 = vmatprep.subr.bf16.mxu0 0
  %182 = vmatpush1.bf16.msra.mxu0 %v166
  %183 = vmatprep.subr.bf16.mxu0 0
  %184 = vmatpush1.bf16.msra.mxu0 %v165
  %185 = vmatprep.subr.bf16.mxu0 0
  %186 = vmatpush1.bf16.msra.mxu0 %v164
  %187 = vmatprep.subr.bf16.mxu0 0
  %188 = vmatpush1.bf16.msra.mxu0 %v163
  %189 = vmatprep.subr.bf16.mxu0 0
  %190 = vmatpush1.bf16.msra.mxu0 %v162
  %191 = vmatprep.subr.bf16.mxu0 0
  %192 = vmatpush1.bf16.msra.mxu0 %v161
  %193 = vmatprep.subr.bf16.mxu0 0
  %194 = vmatpush2.bf16.msra.mxu0 0
  %195 = vmatprep.subr.bf16.mxu0 0
  %196 = vmatpush2.bf16.msra.mxu0 0
  %197 = vmatprep.subr.bf16.mxu0 0
  %198 = vmatpush2.bf16.msra.mxu0 0
  %199 = vmatprep.subr.bf16.mxu0 0
  %200 = vmatpush2.bf16.msra.mxu0 0
  %201 = vmatprep.subr.bf16.mxu0 0
  %202 = vmatpush2.bf16.msra.mxu0 0
  %203 = vmatprep.subr.bf16.mxu0 0
  %204 = vmatpush2.bf16.msra.mxu0 0
  %205 = vmatprep.subr.bf16.mxu0 0
  %206 = vmatpush2.bf16.msra.mxu0 0
  %207 = vmatprep.subr.bf16.mxu0 0
  %208 = vmatpush2.bf16.msra.mxu0 0
  %209 = vmatprep.mubr.bf16.mxu0 0
  %210 = vmatmul.mubr.bf16.gmra.mxu0 %v112
  %v211 = vpop.f32.mrf.mxu0
  %v212 = vadd.f32 0.0, %v211
  %v213 = vpop.f32.mrf.mxu0
  %v214 = vpop.f32.mrf.mxu0
  %v215 = vadd.f32 0.0, %v214
  %v216 = vpop.f32.mrf.mxu0
  %217 = vdwg.mxu0
  %v218 = vpack.c.bf16 %v215, %v212
  %v219 = vld [vmem:[%s4] sm:$0x1]
  %v221 = vpack.i.b16 %v219, %v219
  %v223 = vlaneseq
  %v224 = vshrl.u32 %v223, 7
  %v225 = vsub.s32 0, %v224
  %v226 = vrot.slane %v221, %v225
  %v227 = vadd.bf16 %v218, %v226
  %v228 = vmax.bf16 %v227, 0
  %v230 = vunpack.c.l.b16 %v228
  %v231 = vunpack.c.h.b16 %v228
  %v232 = vpack.c.b16 %v230, %v230
  %v233 = vpack.c.b16 %v231, %v231
  %236 = vst [vmem:[#allocation2] sm:$0xf] %v232
  %237 = vst [vmem:[#allocation2 + $0x8] sm:$0xf] %v233
  %vm238 = vcmask 158720
  %239 = vst.msk [vmem:[#allocation2 + $0x4] sm:$0xf] %vm238, %v34
  %240 = vst.msk [vmem:[#allocation2 + $0xc] sm:$0xf] %vm238, %v35
  %v241 = vld [vmem:[#allocation2] sm:$0xff]
  %v242 = vld [vmem:[#allocation2 + $0x8] sm:$0xff]
  %v243 = vld [vmem:[%s5] sm:$0xf]
  %v244 = vld [vmem:[%s5 + $0x4] sm:$0xf]
  %v245 = vld [vmem:[%s5 + $0x8] sm:$0xf]
  %v246 = vld [vmem:[%s5 + $0xc] sm:$0xf]
  %v247 = vld [vmem:[%s5 + $0x10] sm:$0xf]
  %v248 = vld [vmem:[%s5 + $0x14] sm:$0xf]
  %v249 = vld [vmem:[%s5 + $0x18] sm:$0xf]
  %v250 = vld [vmem:[%s5 + $0x1c] sm:$0xf]
  %v251 = vld [vmem:[%s5 + $0x20] sm:$0xf]
  %v252 = vld [vmem:[%s5 + $0x24] sm:$0xf]
  %v253 = vld [vmem:[%s5 + $0x28] sm:$0xf]
  %v254 = vld [vmem:[%s5 + $0x2c] sm:$0xf]
  %v255 = vld [vmem:[%s5 + $0x30] sm:$0xf]
  %v256 = vld [vmem:[%s5 + $0x34] sm:$0xf]
  %v257 = vld [vmem:[%s5 + $0x38] sm:$0xf]
  %v258 = vld [vmem:[%s5 + $0x3c] sm:$0xf]
  %v259 = vld [vmem:[%s5 + $0x40] sm:$0xf]
  %v260 = vld [vmem:[%s5 + $0x44] sm:$0xf]
  %v261 = vld [vmem:[%s5 + $0x48] sm:$0x3]
  %v264 = vunpack.c.l.b16 %v241
  %v265 = vunpack.c.h.b16 %v241
  %v266 = vunpack.c.l.b16 %v242
  %v267 = vunpack.c.h.b16 %v242
  %v268 = vpack.c.b16 %v266, %v264
  %v269 = vpack.c.b16 %v267, %v265
  %v290 = vunpack.c.l.b16 %v243
  %v291 = vunpack.c.l.b16 %v244
  %v292 = vunpack.c.l.b16 %v245
  %v293 = vunpack.c.l.b16 %v246
  %v294 = vunpack.c.l.b16 %v247
  %v295 = vunpack.c.l.b16 %v248
  %v296 = vunpack.c.l.b16 %v249
  %v297 = vunpack.c.l.b16 %v250
  %v298 = vunpack.c.l.b16 %v251
  %v299 = vunpack.c.l.b16 %v252
  %v300 = vunpack.c.l.b16 %v253
  %v301 = vunpack.c.l.b16 %v254
  %v302 = vunpack.c.l.b16 %v255
  %v303 = vunpack.c.l.b16 %v256
  %v304 = vunpack.c.l.b16 %v257
  %v305 = vunpack.c.l.b16 %v258
  %v306 = vunpack.c.l.b16 %v259
  %v307 = vunpack.c.l.b16 %v260
  %v308 = vunpack.c.l.b16 %v261
  %v309 = vpack.c.b16 %v291, %v290
  %v310 = vpack.c.b16 %v293, %v292
  %v311 = vpack.c.b16 %v295, %v294
  %v312 = vpack.c.b16 %v297, %v296
  %v313 = vpack.c.b16 %v299, %v298
  %v314 = vpack.c.b16 %v301, %v300
  %v315 = vpack.c.b16 %v303, %v302
  %v316 = vpack.c.b16 %v305, %v304
  %v317 = vpack.c.b16 %v307, %v306
  %v318 = vpack.c.b16 %v308, %v308
  %v329 = vsel %vm53, %v269, 0
  %v332 = vsel %vm57, %v318, 0
  %334 = vmatprep.subr.bf16.mxu0 0
  %335 = vmatpush1.bf16.msra.mxu0 %v316
  %336 = vmatprep.subr.bf16.mxu0 0
  %337 = vmatpush1.bf16.msra.mxu0 %v315
  %338 = vmatprep.subr.bf16.mxu0 0
  %339 = vmatpush1.bf16.msra.mxu0 %v314
  %340 = vmatprep.subr.bf16.mxu0 0
  %341 = vmatpush1.bf16.msra.mxu0 %v313
  %342 = vmatprep.subr.bf16.mxu0 0
  %343 = vmatpush1.bf16.msra.mxu0 %v312
  %344 = vmatprep.subr.bf16.mxu0 0
  %345 = vmatpush1.bf16.msra.mxu0 %v311
  %346 = vmatprep.subr.bf16.mxu0 0
  %347 = vmatpush1.bf16.msra.mxu0 %v310
  %348 = vmatprep.subr.bf16.mxu0 0
  %349 = vmatpush1.bf16.msra.mxu0 %v309
  %350 = vmatprep.subr.bf16.mxu0 0
  %351 = vmatpush2.bf16.msra.mxu0 0
  %352 = vmatprep.subr.bf16.mxu0 0
  %353 = vmatpush2.bf16.msra.mxu0 0
  %354 = vmatprep.subr.bf16.mxu0 0
  %355 = vmatpush2.bf16.msra.mxu0 0
  %356 = vmatprep.subr.bf16.mxu0 0
  %357 = vmatpush2.bf16.msra.mxu0 0
  %358 = vmatprep.subr.bf16.mxu0 0
  %359 = vmatpush2.bf16.msra.mxu0 0
  %360 = vmatprep.subr.bf16.mxu0 0
  %361 = vmatpush2.bf16.msra.mxu0 0
  %362 = vmatprep.subr.bf16.mxu0 0
  %363 = vmatpush2.bf16.msra.mxu0 %v332
  %364 = vmatprep.subr.bf16.mxu0 0
  %365 = vmatpush2.bf16.msra.mxu0 %v317
  %366 = vmatprep.mubr.bf16.mxu0 %v329
  %367 = vmatmul.mubr.bf16.gmra.mxu0 %v268
  %v368 = vpop.f32.mrf.mxu0
  %v369 = vadd.f32 0.0, %v368
  %v370 = vpop.f32.mrf.mxu0
  %v371 = vpop.f32.mrf.mxu0
  %v372 = vadd.f32 0.0, %v371
  %v373 = vpop.f32.mrf.mxu0
  %374 = vdwg.mxu0
  %v375 = vpack.c.bf16 %v372, %v369
  %v376 = vld [vmem:[%s6] sm:$0x1]
  %v378 = vpack.i.b16 %v376, %v376
  %v380 = vlaneseq
  %v381 = vshrl.u32 %v380, 7
  %v382 = vsub.s32 0, %v381
  %v383 = vrot.slane %v378, %v382
  %v384 = vadd.bf16 %v375, %v383
  %v385 = vmax.bf16 %v384, 0
  %v386 = vunpack.c.l.bf16 %v385
  %v387 = vunpack.c.h.bf16 %v385
  %v388 = vld [vmem:[%s7] sm:$0x1]
  %v390 = vlaneseq
  %v391 = vshrl.u32 %v390, 7
  %v392 = vsub.s32 0, %v391
  %v393 = vrot.slane %v388, %v392
  %v395 = vmul.f32 %v386, %v393
  %v396 = vmul.f32 %v387, %v393
  %vm397 = vcmask 523264
  %v398 = vsel %vm397, %v395, 0.0
  %399 = vadd.xlane.f32.xlu0 %v398
  %v400 = vpop.xlane.xlu0 %399
  %v401 = vsel %vm397, %v396, 0.0
  %402 = vadd.xlane.f32.xlu0 %v401
  %v403 = vpop.xlane.xlu0 %402
  %s404 = sld [smem:[#allocation3]]
  %v405 = vstv %s404
  %v406 = vadd.f32 %v400, %v405
  %v407 = vadd.f32 %v403, %v405
  %vm408 = vcmask 7168
  %409 = vst.msk [vmem:[%s9] sm:$0xff] %vm408, %v406
  %410 = vst.msk [vmem:[%s9 + $0x8] sm:$0xff] %vm408, %v407
  // Predicated region
  $region38: #{tpu_custom_call.1} parent=0 // pred_check
    _
  $region39: #{tpu_custom_call.1} parent=0 // pred_check_branch
    %412 = sbr.rel (0) target = $region41
  $region40: #{tpu_custom_call.1} parent=0 // pred_region
    _
  $region41: #{tpu_custom_call.1} parent=0 // pred_fallthru
    _
  // Predicated region
  $region42: #{tpu_custom_call.1} parent=0 // pred_check
    _
  $region43: #{tpu_custom_call.1} parent=0 // pred_check_branch
    %414 = sbr.rel (0) target = $region45
  $region44: #{tpu_custom_call.1} parent=0 // pred_region
    _
  $region45: #{tpu_custom_call.1} parent=0 // pred_fallthru
    _

</llo_original>
